<compile_context>
chip_gen: v7x
topology: tpu7x:2x2x1
jax: 0.10.0
libtpu: 0.0.40
codegen_flags: <defaults>
</compile_context>

<pallas_src>
import jax
import jax.numpy as jnp
from jax.experimental import pallas as pl
from jax.experimental.pallas import tpu as pltpu

DROPOUT_P = 0.1
# keep iff bits >= round(p * 2**32)  ->  P(keep) = 1 - p  (to within 2**-32)
DROP_THRESHOLD = int(round(DROPOUT_P * (1 << 32)))   # 429496730


def _attn_tail_kernel(rscale_ref, qk_ref, v_ref, bits_ref, o_ref):
    # rscale_ref: SMEM (1,) f32 holding 1 / inv_scale_factor (multiply, no divide).
    r = rscale_ref[0]

    x = qk_ref[0].astype(jnp.float32)                      # (H, S, S)

    # Numerically stable softmax of x * r over the last axis.  r > 0
    # (inv_scale_factor = sqrt(d)), so the scale folds into the exp argument.
    m = jnp.max(x, axis=-1, keepdims=True)                 # (H, S, 1)
    e = jnp.exp((x - m) * r)                               # (H, S, S)
    denom = jnp.sum(e, axis=-1, keepdims=True)             # (H, S, 1)

    # Fold the softmax normalization and the 1/(1-p) dropout rescale into one
    # per-row (H, S, 1) factor -> a single (S, S)-sized multiply below.
    inv = jnp.float32(1.0 / (1.0 - DROPOUT_P)) / denom     # (H, S, 1)

    # Integer-threshold dropout test directly on the uint32 bits (no shift /
    # float convert / 1/2^24 multiply).
    keep = bits_ref[0] >= jnp.uint32(DROP_THRESHOLD)       # (H, S, S) bool
    p_drop = jnp.where(keep, e * inv, jnp.float32(0.0))    # (H, S, S)

    # bf16 MXU inputs, f32 accumulation; batched over heads (jnp.dot is not
    # batched, so use einsum).
    out = jnp.einsum(
        "hqk,hkd->hqd",
        p_drop.astype(jnp.bfloat16),
        v_ref[0].astype(jnp.bfloat16),
        preferred_element_type=jnp.float32,
    )
    # TODO(synk): a lane-dense (S, H*D) output slab would avoid masked D=64
    # stores, but needs an in-kernel (H,S,D)->(S,H*D) relayout; skipped for
    # lowering robustness at these tiny shapes.
    o_ref[0] = out.astype(o_ref.dtype)


@jax.jit
def attention_tail(qk, value, inv_scale_factor, dropout_bits):
    """qk: (B,H,S,S) f32, value: (B,H,S,D) f32, dropout_bits: (B,H,S,S) u32."""
    B, H, S, _ = qk.shape
    D = value.shape[-1]

    rscale = (jnp.float32(1.0)
              / jnp.asarray(inv_scale_factor, jnp.float32)).reshape((1,))

    grid_spec = pl.GridSpec(
        grid=(B,),
        in_specs=[
            pl.BlockSpec(memory_space=pltpu.SMEM),                    # 1/scale
            pl.BlockSpec((1, H, S, S), lambda b: (b, 0, 0, 0)),       # qk
            pl.BlockSpec((1, H, S, D), lambda b: (b, 0, 0, 0)),       # value
            pl.BlockSpec((1, H, S, S), lambda b: (b, 0, 0, 0)),       # drop bits
        ],
        out_specs=pl.BlockSpec((1, H, S, D), lambda b: (b, 0, 0, 0)),
    )

    return pl.pallas_call(
        _attn_tail_kernel,
        out_shape=jax.ShapeDtypeStruct((B, H, S, D), qk.dtype),
        grid_spec=grid_spec,
        compiler_params=pltpu.CompilerParams(
            dimension_semantics=("parallel",)),
    )(rscale, qk, value, dropout_bits)


if __name__ == "__main__":
    # Small shapes consistent with the module's qk = randn(5, 10, 64, 64):
    # batch=2, heads=4, seq=64, head_dim=64.
    B, H, S, D = 2, 4, 64, 64
    key = jax.random.PRNGKey(0)
    k_qk, k_v, k_drop = jax.random.split(key, 3)
    qk = jax.random.normal(k_qk, (B, H, S, S), dtype=jnp.float32)
    value = jax.random.normal(k_v, (B, H, S, D), dtype=jnp.float32)
    inv_scale_factor = jnp.float32(8.0)  # sqrt(head_dim)
    dropout_bits = jax.random.bits(k_drop, (B, H, S, S), dtype=jnp.uint32)

    out = attention_tail(qk, value, inv_scale_factor, dropout_bits)
    jax.block_until_ready(out)
    assert out.shape == (B, H, S, D)

    # Pure-JAX reference using the same dropout mask; generous tolerance for
    # the bf16-input / f32-accumulate MXU matmul.
    p_ref = jax.nn.softmax(qk / inv_scale_factor, axis=-1)
    keep_ref = dropout_bits >= jnp.uint32(DROP_THRESHOLD)
    p_ref = jnp.where(keep_ref, p_ref / (1.0 - DROPOUT_P), 0.0)
    ref = jnp.einsum("bhqk,bhkd->bhqd", p_ref, value)
    assert bool(jnp.allclose(out, ref, rtol=5e-2, atol=5e-2)), (
        float(jnp.max(jnp.abs(out - ref))))

    print("KERNEL_OK")
</pallas_src>

<mosaic_0001>
module attributes {stable_mosaic.version = 11 : i64} {
  func.func @_attn_tail_kernel(%arg0: i32, %arg1: memref<1xf32, #tpu.memory_space<smem>>, %arg2: memref<1x4x64x64xf32, #tpu.memory_space<vmem>>, %arg3: memref<1x4x64x64xf32, #tpu.memory_space<vmem>>, %arg4: memref<1x4x64x64xi32, #tpu.memory_space<vmem>>, %arg5: memref<1x4x64x64xf32, #tpu.memory_space<vmem>>) attributes {dimension_semantics = [#tpu.dimension_semantics<parallel>], iteration_bounds = array<i64: 2>, scalar_prefetch = 0 : i64, scratch_operands = 0 : i64, tpu.core_type = #tpu.core_type<tc>, window_params = [{transform_indices = @transform_0, window_bounds = array<i64: 1>}, {transform_indices = @transform_1, window_bounds = array<i64: 1, 4, 64, 64>}, {transform_indices = @transform_2, window_bounds = array<i64: 1, 4, 64, 64>}, {transform_indices = @transform_3, window_bounds = array<i64: 1, 4, 64, 64>}, {transform_indices = @transform_4, window_bounds = array<i64: 1, 4, 64, 64>}]} {
    %c0 = arith.constant 0 : index
    %0 = memref.load %arg1[%c0] : memref<1xf32, #tpu.memory_space<smem>>
    %c0_0 = arith.constant 0 : index
    %c0_1 = arith.constant 0 : index
    %c0_2 = arith.constant 0 : index
    %c0_3 = arith.constant 0 : index
    %1 = vector.load %arg2[%c0_0, %c0_1, %c0_2, %c0_3] : memref<1x4x64x64xf32, #tpu.memory_space<vmem>>, vector<1x4x64x64xf32>
    %2 = vector.shape_cast %1 : vector<1x4x64x64xf32> to vector<4x64x64xf32>
    %cst = arith.constant dense<0xFF800000> : vector<4x64xf32>
    %3 = vector.multi_reduction <maximumf>, %2, %cst [2] : vector<4x64x64xf32> to vector<4x64xf32>
    %4 = vector.shape_cast %3 : vector<4x64xf32> to vector<4x64x1xf32>
    %5 = vector.broadcast %4 : vector<4x64x1xf32> to vector<4x64x64xf32>
    %6 = arith.subf %2, %5 : vector<4x64x64xf32>
    %7 = vector.broadcast %0 : f32 to vector<4x64x64xf32>
    %8 = arith.mulf %6, %7 : vector<4x64x64xf32>
    %9 = math.exp %8 : vector<4x64x64xf32>
    %cst_4 = arith.constant dense<0.000000e+00> : vector<4x64xf32>
    %10 = vector.multi_reduction <add>, %9, %cst_4 [2] : vector<4x64x64xf32> to vector<4x64xf32>
    %11 = vector.shape_cast %10 : vector<4x64xf32> to vector<4x64x1xf32>
    %cst_5 = arith.constant 1.11111116 : f32
    %12 = vector.broadcast %cst_5 : f32 to vector<4x64x1xf32>
    %13 = arith.divf %12, %11 : vector<4x64x1xf32>
    %c0_6 = arith.constant 0 : index
    %c0_7 = arith.constant 0 : index
    %c0_8 = arith.constant 0 : index
    %c0_9 = arith.constant 0 : index
    %14 = vector.load %arg4[%c0_6, %c0_7, %c0_8, %c0_9] : memref<1x4x64x64xi32, #tpu.memory_space<vmem>>, vector<1x4x64x64xi32>
    %15 = vector.shape_cast %14 : vector<1x4x64x64xi32> to vector<4x64x64xi32>
    %c429496730_i32 = arith.constant 429496730 : i32
    %16 = vector.broadcast %c429496730_i32 : i32 to vector<4x64x64xi32>
    %17 = arith.cmpi uge, %15, %16 : vector<4x64x64xi32>
    %18 = vector.broadcast %13 : vector<4x64x1xf32> to vector<4x64x64xf32>
    %19 = arith.mulf %9, %18 : vector<4x64x64xf32>
    %cst_10 = arith.constant 0.000000e+00 : f32
    %20 = vector.broadcast %cst_10 : f32 to vector<4x64x64xf32>
    %21 = arith.select %17, %19, %20 : vector<4x64x64xi1>, vector<4x64x64xf32>
    %22 = arith.truncf %21 : vector<4x64x64xf32> to vector<4x64x64xbf16>
    %c0_11 = arith.constant 0 : index
    %c0_12 = arith.constant 0 : index
    %c0_13 = arith.constant 0 : index
    %c0_14 = arith.constant 0 : index
    %23 = vector.load %arg3[%c0_11, %c0_12, %c0_13, %c0_14] : memref<1x4x64x64xf32, #tpu.memory_space<vmem>>, vector<1x4x64x64xf32>
    %24 = vector.shape_cast %23 : vector<1x4x64x64xf32> to vector<4x64x64xf32>
    %25 = arith.truncf %24 : vector<4x64x64xf32> to vector<4x64x64xbf16>
    "tpu.trace_start"() <{level = 10 : i32, message = "hqk,hkd->hqd"}> : () -> ()
    %cst_15 = arith.constant dense<0.000000e+00> : vector<4x64x64xf32>
    %26 = tpu.matmul %22, %25, %cst_15 {dimension_numbers = #tpu.dot_dimension_numbers<[2], [1], [1], [2], [0, 0, 0, 1, 1, 2], [0], [0]>} : vector<4x64x64xbf16>, vector<4x64x64xbf16>, vector<4x64x64xf32> -> vector<4x64x64xf32>
    "tpu.trace_stop"() : () -> ()
    %c0_16 = arith.constant 0 : index
    %c0_17 = arith.constant 0 : index
    %c0_18 = arith.constant 0 : index
    %c0_19 = arith.constant 0 : index
    %27 = vector.load %arg5[%c0_16, %c0_17, %c0_18, %c0_19] : memref<1x4x64x64xf32, #tpu.memory_space<vmem>>, vector<1x4x64x64xf32>
    %28 = vector.shape_cast %27 : vector<1x4x64x64xf32> to vector<4x64x64xf32>
    %29 = vector.shape_cast %26 : vector<4x64x64xf32> to vector<1x4x64x64xf32>
    tpu.vector_store %arg5[%c0_16, %c0_17, %c0_18, %c0_19], %29 {strides = array<i32>} : memref<1x4x64x64xf32, #tpu.memory_space<vmem>>, vector<1x4x64x64xf32>,
    return
  }
  func.func @transform_0(%arg0: i32) -> i32 {
    %c0_i32 = arith.constant 0 : i32
    %c0_i32_0 = arith.constant 0 : i32
    return %c0_i32 : i32
  }
  func.func @transform_1(%arg0: i32) -> (i32, i32, i32, i32) {
    %c0_i32 = arith.constant 0 : i32
    %c0_i32_0 = arith.constant 0 : i32
    %c0_i32_1 = arith.constant 0 : i32
    %c0_i32_2 = arith.constant 0 : i32
    return %arg0, %c0_i32, %c0_i32_0, %c0_i32_1 : i32, i32, i32, i32
  }
  func.func @transform_2(%arg0: i32) -> (i32, i32, i32, i32) {
    %c0_i32 = arith.constant 0 : i32
    %c0_i32_0 = arith.constant 0 : i32
    %c0_i32_1 = arith.constant 0 : i32
    %c0_i32_2 = arith.constant 0 : i32
    return %arg0, %c0_i32, %c0_i32_0, %c0_i32_1 : i32, i32, i32, i32
  }
  func.func @transform_3(%arg0: i32) -> (i32, i32, i32, i32) {
    %c0_i32 = arith.constant 0 : i32
    %c0_i32_0 = arith.constant 0 : i32
    %c0_i32_1 = arith.constant 0 : i32
    %c0_i32_2 = arith.constant 0 : i32
    return %arg0, %c0_i32, %c0_i32_0, %c0_i32_1 : i32, i32, i32, i32
  }
  func.func @transform_4(%arg0: i32) -> (i32, i32, i32, i32) {
    %c0_i32 = arith.constant 0 : i32
    %c0_i32_0 = arith.constant 0 : i32
    %c0_i32_1 = arith.constant 0 : i32
    %c0_i32_2 = arith.constant 0 : i32
    return %arg0, %c0_i32, %c0_i32_0, %c0_i32_1 : i32, i32, i32, i32
  }
}

</mosaic_0001>

<llo_original>
// kernel: attention_tail.1
$region0: #{attention_tail.1}
  #allocation0 [shape = 'u32[]', space=smem, size = 0x4, offset = 0x4, fixed_abs, tag = 'smem constant byte address 0x4 - core index']
  #allocation1 [shape = 'u32[144,128]{1,0:T(1,128)}', space=vmem, size = 0x12000, scoped, tag = 'internal scratch']
  #allocation2 [shape = 'f32[1]{0:T(128)S(6)}', space=smem, size = 0x200, scoped, tag = 'scoped memory for attention_tail.1']
  %s0 = inlined_call_operand.<no memory space> [shape: f32[1], index: 0, kind: input, shape index: {}]
  %s1 = inlined_call_operand.hbm [shape: f32[2,4,64,64], index: 1, kind: input, shape index: {}]
  %s2 = inlined_call_operand.hbm [shape: f32[2,4,64,64], index: 2, kind: input, shape index: {}]
  %s3 = inlined_call_operand.hbm [shape: u32[2,4,64,64], index: 3, kind: input, shape index: {}]
  %s4 = inlined_call_operand.hbm [shape: f32[2,4,64,64], index: 4, kind: output, shape index: {}]
  %s5 = sld [smem:[#allocation0]]
  $region61: #{attention_tail.1} parent=0
    _
  %s7 = ssub.s32 1, %s5
  %s8 = scalar_select 0, %s7, %s5
  %9 = sst [smem:[#allocation2]] %s0
  $region1: #{attention_tail.1} parent=0
    #allocation3 [shape = 'u8[262144]{0}', space=vmem, size = 0x40000, scoped, tag = 'input window, operand 1']
    #allocation4 [shape = 's32[2]{0}', space=sflag, size = 0x8, scoped, tag = 'scoped memory for attention_tail.1']
    #allocation5 [shape = 's32[2]{0}', space=sflag, size = 0x8, scoped, tag = 'scoped memory for attention_tail.1']
    #allocation6 [shape = 'u8[262144]{0}', space=vmem, size = 0x40000, scoped, tag = 'input window, operand 2']
    #allocation7 [shape = 's32[2]{0}', space=sflag, size = 0x8, scoped, tag = 'scoped memory for attention_tail.1']
    #allocation8 [shape = 'u8[262144]{0}', space=vmem, size = 0x40000, scoped, tag = 'input window, operand 3']
    #allocation9 [shape = 'u8[262144]{0}', space=vmem, size = 0x40000, scoped, tag = 'output window, operand 0']
    %10 = vsyncpa [#allocation4], 0
    %s11 = scalar_lea.sflag [#allocation4], 1
    %12 = vsyncpa %s11, 0
    %13 = vsyncpa [#allocation7], 0
    %s14 = scalar_lea.sflag [#allocation7], 1
    %15 = vsyncpa %s14, 0
    %16 = vsyncpa [#allocation5], 0
    %s17 = scalar_lea.sflag [#allocation5], 1
    %18 = vsyncpa %s17, 0
    loop: start=0, step=1, limit=4
    $region2: #{attention_tail.1} parent=1 // loop_pre_header
      _
    $region3: #{attention_tail.1} parent=1 // loop_header
      %s20 = sphi 0, %s24
      %p21 = scmp.ge.s32.totalorder %s20, 4
      %s28 = sphi 0, %s28
      %s30 = sphi 0, %s28
      %s31 = sphi 0, %s30
      %s45 = sphi 0, %s31
      %s51 = sphi 0, %s53
      %s54 = sphi 0, %s51
      %s55 = sphi 0, %s54
      %s71 = sphi 0, %s55
      %s77 = sphi 0, %s79
      %s80 = sphi 0, %s77
      %s81 = sphi 0, %s80
      %s97 = sphi 0, %s81
      %s103 = sphi 0, %s105
      %s106 = sphi 0, %s103
      %s107 = sphi 0, %s106
      %s123 = sphi 0, %s107
      %s129 = sphi 0, %s131
      %s132 = sphi 0, %s129
      %s133 = sphi 0, %s132
      %s149 = sphi 0, %s133
    $region4: #{attention_tail.1} parent=1 // loop_header_branch
      %23 = sbr.rel (%p21) target = $region8
    $region5: #{attention_tail.1} parent=1 // loop_body
      %s25 = ssub.s32 %s20, 1
      %s26 = ssub.s32 %s20, 2
      %s27 = sadd.s32 %s20, 1
      %s29 = sadd.s32 %s28, 1
      %p32 = scmp.eq.s32.totalorder %s20, 1
      %p33 = scmp.ne.s32.totalorder %s28, %s30
      %p34 = scmp.eq.s32.totalorder %s20, 0
      %p35 = por %p33, %p34
      %p36 = scmp.ne.s32.totalorder %s28, %s30
      %p37 = scmp.eq.s32.totalorder %s25, 1
      %p38 = por %p36, %p37
      %p39 = scmp.ne.s32.totalorder %s30, %s31
      %p40 = scmp.eq.s32.totalorder %s25, 0
      %p41 = por %p39, %p40
      %p42 = scmp.ne.s32.totalorder %s30, %s31
      %p43 = scmp.eq.s32.totalorder %s26, 1
      %p44 = por %p42, %p43
      %p46 = scmp.ne.s32.totalorder %s31, %s45
      %p47 = scmp.eq.s32.totalorder %s26, 0
      %p48 = por %p46, %p47
      %s49 = ssub.s32 %s20, %s27
      %p50 = scmp.eq.s32.totalorder %s49, 0
      %s52 = sadd.s32 %s51, 1
      %s53 = scalar_select %p50, %s51, %s52
      %p56 = pneg %p50
      %p57 = scmp.eq.s32.totalorder %s20, 1
      %p58 = por %p56, %p57
      %p59 = scmp.ne.s32.totalorder %s51, %s54
      %p60 = scmp.eq.s32.totalorder %s20, 0
      %p61 = por %p59, %p60
      %p62 = scmp.ne.s32.totalorder %s51, %s54
      %p63 = scmp.eq.s32.totalorder %s25, 1
      %p64 = por %p62, %p63
      %p65 = scmp.ne.s32.totalorder %s54, %s55
      %p66 = scmp.eq.s32.totalorder %s25, 0
      %p67 = por %p65, %p66
      %p68 = scmp.ne.s32.totalorder %s54, %s55
      %p69 = scmp.eq.s32.totalorder %s26, 1
      %p70 = por %p68, %p69
      %p72 = scmp.ne.s32.totalorder %s55, %s71
      %p73 = scmp.eq.s32.totalorder %s26, 0
      %p74 = por %p72, %p73
      %s75 = ssub.s32 %s20, %s27
      %p76 = scmp.eq.s32.totalorder %s75, 0
      %s78 = sadd.s32 %s77, 1
      %s79 = scalar_select %p76, %s77, %s78
      %p82 = pneg %p76
      %p83 = scmp.eq.s32.totalorder %s20, 1
      %p84 = por %p82, %p83
      %p85 = scmp.ne.s32.totalorder %s77, %s80
      %p86 = scmp.eq.s32.totalorder %s20, 0
      %p87 = por %p85, %p86
      %p88 = scmp.ne.s32.totalorder %s77, %s80
      %p89 = scmp.eq.s32.totalorder %s25, 1
      %p90 = por %p88, %p89
      %p91 = scmp.ne.s32.totalorder %s80, %s81
      %p92 = scmp.eq.s32.totalorder %s25, 0
      %p93 = por %p91, %p92
      %p94 = scmp.ne.s32.totalorder %s80, %s81
      %p95 = scmp.eq.s32.totalorder %s26, 1
      %p96 = por %p94, %p95
      %p98 = scmp.ne.s32.totalorder %s81, %s97
      %p99 = scmp.eq.s32.totalorder %s26, 0
      %p100 = por %p98, %p99
      %s101 = ssub.s32 %s20, %s27
      %p102 = scmp.eq.s32.totalorder %s101, 0
      %s104 = sadd.s32 %s103, 1
      %s105 = scalar_select %p102, %s103, %s104
      %p108 = pneg %p102
      %p109 = scmp.eq.s32.totalorder %s20, 1
      %p110 = por %p108, %p109
      %p111 = scmp.ne.s32.totalorder %s103, %s106
      %p112 = scmp.eq.s32.totalorder %s20, 0
      %p113 = por %p111, %p112
      %p114 = scmp.ne.s32.totalorder %s103, %s106
      %p115 = scmp.eq.s32.totalorder %s25, 1
      %p116 = por %p114, %p115
      %p117 = scmp.ne.s32.totalorder %s106, %s107
      %p118 = scmp.eq.s32.totalorder %s25, 0
      %p119 = por %p117, %p118
      %p120 = scmp.ne.s32.totalorder %s106, %s107
      %p121 = scmp.eq.s32.totalorder %s26, 1
      %p122 = por %p120, %p121
      %p124 = scmp.ne.s32.totalorder %s107, %s123
      %p125 = scmp.eq.s32.totalorder %s26, 0
      %p126 = por %p124, %p125
      %s127 = ssub.s32 %s20, %s27
      %p128 = scmp.eq.s32.totalorder %s127, 0
      %s130 = sadd.s32 %s129, 1
      %s131 = scalar_select %p128, %s129, %s130
      %p134 = pneg %p128
      %p135 = scmp.eq.s32.totalorder %s20, 1
      %p136 = por %p134, %p135
      %p137 = scmp.ne.s32.totalorder %s129, %s132
      %p138 = scmp.eq.s32.totalorder %s20, 0
      %p139 = por %p137, %p138
      %p140 = scmp.ne.s32.totalorder %s129, %s132
      %p141 = scmp.eq.s32.totalorder %s25, 1
      %p142 = por %p140, %p141
      %p143 = scmp.ne.s32.totalorder %s132, %s133
      %p144 = scmp.eq.s32.totalorder %s25, 0
      %p145 = por %p143, %p144
      %p146 = scmp.ne.s32.totalorder %s132, %s133
      %p147 = scmp.eq.s32.totalorder %s26, 1
      %p148 = por %p146, %p147
      %p150 = scmp.ne.s32.totalorder %s133, %s149
      %p151 = scmp.eq.s32.totalorder %s26, 0
      %p152 = por %p150, %p151
      %p153 = scmp.le.s32.totalorder 1, %s20
      %p154 = scmp.lt.s32.totalorder %s20, 3
      %p155 = pnand %p153, %p154
      %p156 = pneg %p155
      // Predicated region
      $region9: #{attention_tail.1} parent=5 // pred_check
        _
      $region10: #{attention_tail.1} parent=5 // pred_check_branch
        %158 = sbr.rel (%p155) target = $region12
      $region11: #{attention_tail.1} parent=5 // pred_region
        %s159 = ssub.s32 %s20, 1
        // Predicated region
        $region13: #{attention_tail.1} parent=11 // pred_check
          %p160 = pneg %p41
        $region14: #{attention_tail.1} parent=11 // pred_check_branch
          %162 = sbr.rel (%p160) target = $region16
        $region15: #{attention_tail.1} parent=11 // pred_region
          _
        $region16: #{attention_tail.1} parent=11 // pred_fallthru
          _
      $region12: #{attention_tail.1} parent=5 // pred_fallthru
        _
      %p163 = scmp.lt.s32.totalorder %s20, 2
      // Predicated region
      $region17: #{attention_tail.1} parent=5 // pred_check
        %p164 = pneg %p163
      $region18: #{attention_tail.1} parent=5 // pred_check_branch
        %166 = sbr.rel (%p164) target = $region20
      $region19: #{attention_tail.1} parent=5 // pred_region
        // Predicated region
        $region21: #{attention_tail.1} parent=19 // pred_check
          %p167 = pneg %p61
        $region22: #{attention_tail.1} parent=19 // pred_check_branch
          %169 = sbr.rel (%p167) target = $region24
        $region23: #{attention_tail.1} parent=19 // pred_region
          %s170 = sand.u32 %s51, 1
          %s171 = scalar_lea.sflag [#allocation4], %s170
          %s172 = sand.u32 %s51, 1
          %s173 = smul.addr %s172, 256
          %s174 = scalar_lea.vmem [#allocation3], %s173
          %s176 = ssub.s32 4096, 4096
          %177 = vsyncadd %s171, %s176
          %s178 = smul.addr %s20, 32
          %s179 = smul.addr %s178, 128
          %s180 = scalar_lea.hbm %s1, %s179
          %s181 = sshll.u32 %s174, 4
          %s182 = int_to_ptr.vmem [resolvable:$true] %s181
          %187 = dma.hbm_to_vmem [thread:$0]  %s180, 4096, %s182, %s171, 128, 128, 8
        $region24: #{attention_tail.1} parent=19 // pred_fallthru
          _
        // Predicated region
        $region25: #{attention_tail.1} parent=19 // pred_check
          %p188 = pneg %p87
        $region26: #{attention_tail.1} parent=19 // pred_check_branch
          %190 = sbr.rel (%p188) target = $region28
        $region27: #{attention_tail.1} parent=19 // pred_region
          %s191 = sand.u32 %s20, 1
          %s192 = scalar_lea.sflag [#allocation7], %s191
          %s193 = sand.u32 %s77, 1
          %s194 = smul.addr %s193, 256
          %s195 = scalar_lea.vmem [#allocation6], %s194
          %s197 = ssub.s32 4096, 4096
          %198 = vsyncadd %s192, %s197
          %s199 = smul.addr %s20, 32
          %s200 = smul.addr %s199, 128
          %s201 = scalar_lea.hbm %s2, %s200
          %s202 = sshll.u32 %s195, 4
          %s203 = int_to_ptr.vmem [resolvable:$true] %s202
          %208 = dma.hbm_to_vmem [thread:$0]  %s201, 4096, %s203, %s192, 128, 128, 8
        $region28: #{attention_tail.1} parent=19 // pred_fallthru
          _
        // Predicated region
        $region29: #{attention_tail.1} parent=19 // pred_check
          %p209 = pneg %p113
        $region30: #{attention_tail.1} parent=19 // pred_check_branch
          %211 = sbr.rel (%p209) target = $region32
        $region31: #{attention_tail.1} parent=19 // pred_region
          %s212 = sand.u32 %s20, 1
          %s213 = scalar_lea.sflag [#allocation7], %s212
          %s214 = sand.u32 %s103, 1
          %s215 = smul.addr %s214, 256
          %s216 = scalar_lea.vmem [#allocation8], %s215
          %s218 = ssub.s32 4096, 4096
          %219 = vsyncadd %s213, %s218
          %s220 = smul.addr %s20, 32
          %s221 = smul.addr %s220, 128
          %s222 = scalar_lea.hbm %s3, %s221
          %s223 = sshll.u32 %s216, 4
          %s224 = int_to_ptr.vmem [resolvable:$true] %s223
          %229 = dma.hbm_to_vmem [thread:$0]  %s222, 4096, %s224, %s213, 128, 128, 8
        $region32: #{attention_tail.1} parent=19 // pred_fallthru
          _
      $region20: #{attention_tail.1} parent=5 // pred_fallthru
        _
      %p230 = scmp.le.s32.totalorder 1, %s20
      %p231 = scmp.lt.s32.totalorder %s20, 3
      %p232 = pnand %p230, %p231
      %p233 = pneg %p232
      // Predicated region
      $region33: #{attention_tail.1} parent=5 // pred_check
        _
      $region34: #{attention_tail.1} parent=5 // pred_check_branch
        %235 = sbr.rel (%p232) target = $region36
      $region35: #{attention_tail.1} parent=5 // pred_region
        %s236 = ssub.s32 %s20, 1
        %s237 = sand.u32 %s54, 1
        %s238 = scalar_lea.sflag [#allocation4], %s237
        %s239 = sand.u32 %s54, 1
        %s240 = smul.addr %s239, 256
        %s241 = scalar_lea.vmem [#allocation3], %s240
        // Predicated region
        $region37: #{attention_tail.1} parent=35 // pred_check
          %p242 = pneg %p67
        $region38: #{attention_tail.1} parent=35 // pred_check_branch
          %244 = sbr.rel (%p242) target = $region40
        $region39: #{attention_tail.1} parent=35 // pred_region
          %245 = dma.done %s238, 4096
        $region40: #{attention_tail.1} parent=35 // pred_fallthru
          _
        %s246 = sand.u32 %s25, 1
        %s247 = scalar_lea.sflag [#allocation7], %s246
        %s248 = sand.u32 %s80, 1
        %s249 = smul.addr %s248, 256
        %s250 = scalar_lea.vmem [#allocation6], %s249
        // Predicated region
        $region41: #{attention_tail.1} parent=35 // pred_check
          %p251 = pneg %p93
        $region42: #{attention_tail.1} parent=35 // pred_check_branch
          %253 = sbr.rel (%p251) target = $region44
        $region43: #{attention_tail.1} parent=35 // pred_region
          %254 = dma.done %s247, 4096
        $region44: #{attention_tail.1} parent=35 // pred_fallthru
          _
        %s255 = sand.u32 %s25, 1
        %s256 = scalar_lea.sflag [#allocation7], %s255
        %s257 = sand.u32 %s106, 1
        %s258 = smul.addr %s257, 256
        %s259 = scalar_lea.vmem [#allocation8], %s258
        // Predicated region
        $region45: #{attention_tail.1} parent=35 // pred_check
          %p260 = pneg %p119
        $region46: #{attention_tail.1} parent=35 // pred_check_branch
          %262 = sbr.rel (%p260) target = $region48
        $region47: #{attention_tail.1} parent=35 // pred_region
          %263 = dma.done %s256, 4096
        $region48: #{attention_tail.1} parent=35 // pred_fallthru
          _
        %p264 = pneg %p41
        %p265 = pneg %p38
        %s266 = sand.u32 %s54, 1
        %s267 = scalar_lea.sflag [#allocation4], %s266
        %s268 = sand.u32 %s54, 1
        %s269 = smul.addr %s268, 256
        %s270 = scalar_lea.vmem [#allocation3], %s269
        %p271 = pneg %p67
        %p272 = pneg %p64
        %s273 = sand.u32 %s25, 1
        %s274 = scalar_lea.sflag [#allocation7], %s273
        %s275 = sand.u32 %s80, 1
        %s276 = smul.addr %s275, 256
        %s277 = scalar_lea.vmem [#allocation6], %s276
        %p278 = pneg %p93
        %p279 = pneg %p90
        %s280 = sand.u32 %s25, 1
        %s281 = scalar_lea.sflag [#allocation7], %s280
        %s282 = sand.u32 %s106, 1
        %s283 = smul.addr %s282, 256
        %s284 = scalar_lea.vmem [#allocation8], %s283
        %p285 = pneg %p119
        %p286 = pneg %p116
        %p287 = pneg %p145
        %p288 = pneg %p142
        %s289 = sand.u32 %s132, 1
        %s290 = scalar_lea.sflag [#allocation5], %s289
        %s291 = sand.u32 %s132, 1
        %s292 = smul.addr %s291, 256
        %s293 = scalar_lea.vmem [#allocation9], %s292
        %s295 = sld [smem:[#allocation2]]
        %v296 = vld [vmem:[%s241] sm:$0xff]
        %v297 = vld [vmem:[%s241 + $0x8] sm:$0xff]
        %v298 = vld [vmem:[%s241 + $0x10] sm:$0xff]
        %v299 = vld [vmem:[%s241 + $0x18] sm:$0xff]
        %v300 = vld [vmem:[%s241 + $0x20] sm:$0xff]
        %v301 = vld [vmem:[%s241 + $0x28] sm:$0xff]
        %v302 = vld [vmem:[%s241 + $0x30] sm:$0xff]
        %v303 = vld [vmem:[%s241 + $0x38] sm:$0xff]
        %v304 = vld [vmem:[%s241 + $0x40] sm:$0xff]
        %v305 = vld [vmem:[%s241 + $0x48] sm:$0xff]
        %v306 = vld [vmem:[%s241 + $0x50] sm:$0xff]
        %v307 = vld [vmem:[%s241 + $0x58] sm:$0xff]
        %v308 = vld [vmem:[%s241 + $0x60] sm:$0xff]
        %v309 = vld [vmem:[%s241 + $0x68] sm:$0xff]
        %v310 = vld [vmem:[%s241 + $0x70] sm:$0xff]
        %v311 = vld [vmem:[%s241 + $0x78] sm:$0xff]
        %v312 = vld [vmem:[%s241 + $0x80] sm:$0xff]
        %v313 = vld [vmem:[%s241 + $0x88] sm:$0xff]
        %v314 = vld [vmem:[%s241 + $0x90] sm:$0xff]
        %v315 = vld [vmem:[%s241 + $0x98] sm:$0xff]
        %v316 = vld [vmem:[%s241 + $0xa0] sm:$0xff]
        %v317 = vld [vmem:[%s241 + $0xa8] sm:$0xff]
        %v318 = vld [vmem:[%s241 + $0xb0] sm:$0xff]
        %v319 = vld [vmem:[%s241 + $0xb8] sm:$0xff]
        %v320 = vld [vmem:[%s241 + $0xc0] sm:$0xff]
        %v321 = vld [vmem:[%s241 + $0xc8] sm:$0xff]
        %v322 = vld [vmem:[%s241 + $0xd0] sm:$0xff]
        %v323 = vld [vmem:[%s241 + $0xd8] sm:$0xff]
        %v324 = vld [vmem:[%s241 + $0xe0] sm:$0xff]
        %v325 = vld [vmem:[%s241 + $0xe8] sm:$0xff]
        %v326 = vld [vmem:[%s241 + $0xf0] sm:$0xff]
        %v327 = vld [vmem:[%s241 + $0xf8] sm:$0xff]
        %vm328 = vcmask 523264
        %v329 = vsel %vm328, %v296, -inf
        %330 = vmax.xlane.f32.xlu0 %v329
        %v331 = vpop.xlane.xlu0 %330
        %v332 = vsel %vm328, %v297, -inf
        %333 = vmax.xlane.f32.xlu0 %v332
        %v334 = vpop.xlane.xlu0 %333
        %v335 = vsel %vm328, %v298, -inf
        %336 = vmax.xlane.f32.xlu0 %v335
        %v337 = vpop.xlane.xlu0 %336
        %v338 = vsel %vm328, %v299, -inf
        %339 = vmax.xlane.f32.xlu0 %v338
        %v340 = vpop.xlane.xlu0 %339
        %v341 = vsel %vm328, %v300, -inf
        %342 = vmax.xlane.f32.xlu0 %v341
        %v343 = vpop.xlane.xlu0 %342
        %v344 = vsel %vm328, %v301, -inf
        %345 = vmax.xlane.f32.xlu0 %v344
        %v346 = vpop.xlane.xlu0 %345
        %v347 = vsel %vm328, %v302, -inf
        %348 = vmax.xlane.f32.xlu0 %v347
        %v349 = vpop.xlane.xlu0 %348
        %v350 = vsel %vm328, %v303, -inf
        %351 = vmax.xlane.f32.xlu0 %v350
        %v352 = vpop.xlane.xlu0 %351
        %v353 = vsel %vm328, %v304, -inf
        %354 = vmax.xlane.f32.xlu0 %v353
        %v355 = vpop.xlane.xlu0 %354
        %v356 = vsel %vm328, %v305, -inf
        %357 = vmax.xlane.f32.xlu0 %v356
        %v358 = vpop.xlane.xlu0 %357
        %v359 = vsel %vm328, %v306, -inf
        %360 = vmax.xlane.f32.xlu0 %v359
        %v361 = vpop.xlane.xlu0 %360
        %v362 = vsel %vm328, %v307, -inf
        %363 = vmax.xlane.f32.xlu0 %v362
        %v364 = vpop.xlane.xlu0 %363
        %v365 = vsel %vm328, %v308, -inf
        %366 = vmax.xlane.f32.xlu0 %v365
        %v367 = vpop.xlane.xlu0 %366
        %v368 = vsel %vm328, %v309, -inf
        %369 = vmax.xlane.f32.xlu0 %v368
        %v370 = vpop.xlane.xlu0 %369
        %v371 = vsel %vm328, %v310, -inf
        %372 = vmax.xlane.f32.xlu0 %v371
        %v373 = vpop.xlane.xlu0 %372
        %v374 = vsel %vm328, %v311, -inf
        %375 = vmax.xlane.f32.xlu0 %v374
        %v376 = vpop.xlane.xlu0 %375
        %v377 = vsel %vm328, %v312, -inf
        %378 = vmax.xlane.f32.xlu0 %v377
        %v379 = vpop.xlane.xlu0 %378
        %v380 = vsel %vm328, %v313, -inf
        %381 = vmax.xlane.f32.xlu0 %v380
        %v382 = vpop.xlane.xlu0 %381
        %v383 = vsel %vm328, %v314, -inf
        %384 = vmax.xlane.f32.xlu0 %v383
        %v385 = vpop.xlane.xlu0 %384
        %v386 = vsel %vm328, %v315, -inf
        %387 = vmax.xlane.f32.xlu0 %v386
        %v388 = vpop.xlane.xlu0 %387
        %v389 = vsel %vm328, %v316, -inf
        %390 = vmax.xlane.f32.xlu0 %v389
        %v391 = vpop.xlane.xlu0 %390
        %v392 = vsel %vm328, %v317, -inf
        %393 = vmax.xlane.f32.xlu0 %v392
        %v394 = vpop.xlane.xlu0 %393
        %v395 = vsel %vm328, %v318, -inf
        %396 = vmax.xlane.f32.xlu0 %v395
        %v397 = vpop.xlane.xlu0 %396
        %v398 = vsel %vm328, %v319, -inf
        %399 = vmax.xlane.f32.xlu0 %v398
        %v400 = vpop.xlane.xlu0 %399
        %v401 = vsel %vm328, %v320, -inf
        %402 = vmax.xlane.f32.xlu0 %v401
        %v403 = vpop.xlane.xlu0 %402
        %v404 = vsel %vm328, %v321, -inf
        %405 = vmax.xlane.f32.xlu0 %v404
        %v406 = vpop.xlane.xlu0 %405
        %v407 = vsel %vm328, %v322, -inf
        %408 = vmax.xlane.f32.xlu0 %v407
        %v409 = vpop.xlane.xlu0 %408
        %v410 = vsel %vm328, %v323, -inf
        %411 = vmax.xlane.f32.xlu0 %v410
        %v412 = vpop.xlane.xlu0 %411
        %v413 = vsel %vm328, %v324, -inf
        %414 = vmax.xlane.f32.xlu0 %v413
        %v415 = vpop.xlane.xlu0 %414
        %v416 = vsel %vm328, %v325, -inf
        %417 = vmax.xlane.f32.xlu0 %v416
        %v418 = vpop.xlane.xlu0 %417
        %v419 = vsel %vm328, %v326, -inf
        %420 = vmax.xlane.f32.xlu0 %v419
        %v421 = vpop.xlane.xlu0 %420
        %v422 = vsel %vm328, %v327, -inf
        %423 = vmax.xlane.f32.xlu0 %v422
        %v424 = vpop.xlane.xlu0 %423
        %v425 = vsub.f32 %v296, %v331
        %v426 = vsub.f32 %v297, %v334
        %v427 = vsub.f32 %v298, %v337
        %v428 = vsub.f32 %v299, %v340
        %v429 = vsub.f32 %v300, %v343
        %v430 = vsub.f32 %v301, %v346
        %v431 = vsub.f32 %v302, %v349
        %v432 = vsub.f32 %v303, %v352
        %v433 = vsub.f32 %v304, %v355
        %v434 = vsub.f32 %v305, %v358
        %v435 = vsub.f32 %v306, %v361
        %v436 = vsub.f32 %v307, %v364
        %v437 = vsub.f32 %v308, %v367
        %v438 = vsub.f32 %v309, %v370
        %v439 = vsub.f32 %v310, %v373
        %v440 = vsub.f32 %v311, %v376
        %v441 = vsub.f32 %v312, %v379
        %v442 = vsub.f32 %v313, %v382
        %v443 = vsub.f32 %v314, %v385
        %v444 = vsub.f32 %v315, %v388
        %v445 = vsub.f32 %v316, %v391
        %v446 = vsub.f32 %v317, %v394
        %v447 = vsub.f32 %v318, %v397
        %v448 = vsub.f32 %v319, %v400
        %v449 = vsub.f32 %v320, %v403
        %v450 = vsub.f32 %v321, %v406
        %v451 = vsub.f32 %v322, %v409
        %v452 = vsub.f32 %v323, %v412
        %v453 = vsub.f32 %v324, %v415
        %v454 = vsub.f32 %v325, %v418
        %v455 = vsub.f32 %v326, %v421
        %v456 = vsub.f32 %v327, %v424
        %v457 = vstv %s295
        %v458 = vmul.f32 %v425, %v457
        %v459 = vmul.f32 %v426, %v457
        %v460 = vmul.f32 %v427, %v457
        %v461 = vmul.f32 %v428, %v457
        %v462 = vmul.f32 %v429, %v457
        %v463 = vmul.f32 %v430, %v457
        %v464 = vmul.f32 %v431, %v457
        %v465 = vmul.f32 %v432, %v457
        %v466 = vmul.f32 %v433, %v457
        %v467 = vmul.f32 %v434, %v457
        %v468 = vmul.f32 %v435, %v457
        %v469 = vmul.f32 %v436, %v457
        %v470 = vmul.f32 %v437, %v457
        %v471 = vmul.f32 %v438, %v457
        %v472 = vmul.f32 %v439, %v457
        %v473 = vmul.f32 %v440, %v457
        %v474 = vmul.f32 %v441, %v457
        %v475 = vmul.f32 %v442, %v457
        %v476 = vmul.f32 %v443, %v457
        %v477 = vmul.f32 %v444, %v457
        %v478 = vmul.f32 %v445, %v457
        %v479 = vmul.f32 %v446, %v457
        %v480 = vmul.f32 %v447, %v457
        %v481 = vmul.f32 %v448, %v457
        %v482 = vmul.f32 %v449, %v457
        %v483 = vmul.f32 %v450, %v457
        %v484 = vmul.f32 %v451, %v457
        %v485 = vmul.f32 %v452, %v457
        %v486 = vmul.f32 %v453, %v457
        %v487 = vmul.f32 %v454, %v457
        %v488 = vmul.f32 %v455, %v457
        %v489 = vmul.f32 %v456, %v457
        %v490 = vmul.f32 %v458, 1.442695
        %v491 = vpow.pop %v490
        %v492 = vmul.f32 %v459, 1.442695
        %v493 = vpow.pop %v492
        %v494 = vmul.f32 %v460, 1.442695
        %v495 = vpow.pop %v494
        %v496 = vmul.f32 %v461, 1.442695
        %v497 = vpow.pop %v496
        %v498 = vmul.f32 %v462, 1.442695
        %v499 = vpow.pop %v498
        %v500 = vmul.f32 %v463, 1.442695
        %v501 = vpow.pop %v500
        %v502 = vmul.f32 %v464, 1.442695
        %v503 = vpow.pop %v502
        %v504 = vmul.f32 %v465, 1.442695
        %v505 = vpow.pop %v504
        %v506 = vmul.f32 %v466, 1.442695
        %v507 = vpow.pop %v506
        %v508 = vmul.f32 %v467, 1.442695
        %v509 = vpow.pop %v508
        %v510 = vmul.f32 %v468, 1.442695
        %v511 = vpow.pop %v510
        %v512 = vmul.f32 %v469, 1.442695
        %v513 = vpow.pop %v512
        %v514 = vmul.f32 %v470, 1.442695
        %v515 = vpow.pop %v514
        %v516 = vmul.f32 %v471, 1.442695
        %v517 = vpow.pop %v516
        %v518 = vmul.f32 %v472, 1.442695
        %v519 = vpow.pop %v518
        %v520 = vmul.f32 %v473, 1.442695
        %v521 = vpow.pop %v520
        %v522 = vmul.f32 %v474, 1.442695
        %v523 = vpow.pop %v522
        %v524 = vmul.f32 %v475, 1.442695
        %v525 = vpow.pop %v524
        %v526 = vmul.f32 %v476, 1.442695
        %v527 = vpow.pop %v526
        %v528 = vmul.f32 %v477, 1.442695
        %v529 = vpow.pop %v528
        %v530 = vmul.f32 %v478, 1.442695
        %v531 = vpow.pop %v530
        %v532 = vmul.f32 %v479, 1.442695
        %v533 = vpow.pop %v532
        %v534 = vmul.f32 %v480, 1.442695
        %v535 = vpow.pop %v534
        %v536 = vmul.f32 %v481, 1.442695
        %v537 = vpow.pop %v536
        %v538 = vmul.f32 %v482, 1.442695
        %v539 = vpow.pop %v538
        %v540 = vmul.f32 %v483, 1.442695
        %v541 = vpow.pop %v540
        %v542 = vmul.f32 %v484, 1.442695
        %v543 = vpow.pop %v542
        %v544 = vmul.f32 %v485, 1.442695
        %v545 = vpow.pop %v544
        %v546 = vmul.f32 %v486, 1.442695
        %v547 = vpow.pop %v546
        %v548 = vmul.f32 %v487, 1.442695
        %v549 = vpow.pop %v548
        %v550 = vmul.f32 %v488, 1.442695
        %v551 = vpow.pop %v550
        %v552 = vmul.f32 %v489, 1.442695
        %v553 = vpow.pop %v552
        %v554 = vsel %vm328, %v491, 0.0
        %555 = vadd.xlane.f32.xlu0 %v554
        %v556 = vpop.xlane.xlu0 %555
        %v557 = vsel %vm328, %v493, 0.0
        %558 = vadd.xlane.f32.xlu0 %v557
        %v559 = vpop.xlane.xlu0 %558
        %v560 = vsel %vm328, %v495, 0.0
        %561 = vadd.xlane.f32.xlu0 %v560
        %v562 = vpop.xlane.xlu0 %561
        %v563 = vsel %vm328, %v497, 0.0
        %564 = vadd.xlane.f32.xlu0 %v563
        %v565 = vpop.xlane.xlu0 %564
        %v566 = vsel %vm328, %v499, 0.0
        %567 = vadd.xlane.f32.xlu0 %v566
        %v568 = vpop.xlane.xlu0 %567
        %v569 = vsel %vm328, %v501, 0.0
        %570 = vadd.xlane.f32.xlu0 %v569
        %v571 = vpop.xlane.xlu0 %570
        %v572 = vsel %vm328, %v503, 0.0
        %573 = vadd.xlane.f32.xlu0 %v572
        %v574 = vpop.xlane.xlu0 %573
        %v575 = vsel %vm328, %v505, 0.0
        %576 = vadd.xlane.f32.xlu0 %v575
        %v577 = vpop.xlane.xlu0 %576
        %v578 = vsel %vm328, %v507, 0.0
        %579 = vadd.xlane.f32.xlu0 %v578
        %v580 = vpop.xlane.xlu0 %579
        %v581 = vsel %vm328, %v509, 0.0
        %582 = vadd.xlane.f32.xlu0 %v581
        %v583 = vpop.xlane.xlu0 %582
        %v584 = vsel %vm328, %v511, 0.0
        %585 = vadd.xlane.f32.xlu0 %v584
        %v586 = vpop.xlane.xlu0 %585
        %v587 = vsel %vm328, %v513, 0.0
        %588 = vadd.xlane.f32.xlu0 %v587
        %v589 = vpop.xlane.xlu0 %588
        %v590 = vsel %vm328, %v515, 0.0
        %591 = vadd.xlane.f32.xlu0 %v590
        %v592 = vpop.xlane.xlu0 %591
        %v593 = vsel %vm328, %v517, 0.0
        %594 = vadd.xlane.f32.xlu0 %v593
        %v595 = vpop.xlane.xlu0 %594
        %v596 = vsel %vm328, %v519, 0.0
        %597 = vadd.xlane.f32.xlu0 %v596
        %v598 = vpop.xlane.xlu0 %597
        %v599 = vsel %vm328, %v521, 0.0
        %600 = vadd.xlane.f32.xlu0 %v599
        %v601 = vpop.xlane.xlu0 %600
        %v602 = vsel %vm328, %v523, 0.0
        %603 = vadd.xlane.f32.xlu0 %v602
        %v604 = vpop.xlane.xlu0 %603
        %v605 = vsel %vm328, %v525, 0.0
        %606 = vadd.xlane.f32.xlu0 %v605
        %v607 = vpop.xlane.xlu0 %606
        %v608 = vsel %vm328, %v527, 0.0
        %609 = vadd.xlane.f32.xlu0 %v608
        %v610 = vpop.xlane.xlu0 %609
        %v611 = vsel %vm328, %v529, 0.0
        %612 = vadd.xlane.f32.xlu0 %v611
        %v613 = vpop.xlane.xlu0 %612
        %v614 = vsel %vm328, %v531, 0.0
        %615 = vadd.xlane.f32.xlu0 %v614
        %v616 = vpop.xlane.xlu0 %615
        %v617 = vsel %vm328, %v533, 0.0
        %618 = vadd.xlane.f32.xlu0 %v617
        %v619 = vpop.xlane.xlu0 %618
        %v620 = vsel %vm328, %v535, 0.0
        %621 = vadd.xlane.f32.xlu0 %v620
        %v622 = vpop.xlane.xlu0 %621
        %v623 = vsel %vm328, %v537, 0.0
        %624 = vadd.xlane.f32.xlu0 %v623
        %v625 = vpop.xlane.xlu0 %624
        %v626 = vsel %vm328, %v539, 0.0
        %627 = vadd.xlane.f32.xlu0 %v626
        %v628 = vpop.xlane.xlu0 %627
        %v629 = vsel %vm328, %v541, 0.0
        %630 = vadd.xlane.f32.xlu0 %v629
        %v631 = vpop.xlane.xlu0 %630
        %v632 = vsel %vm328, %v543, 0.0
        %633 = vadd.xlane.f32.xlu0 %v632
        %v634 = vpop.xlane.xlu0 %633
        %v635 = vsel %vm328, %v545, 0.0
        %636 = vadd.xlane.f32.xlu0 %v635
        %v637 = vpop.xlane.xlu0 %636
        %v638 = vsel %vm328, %v547, 0.0
        %639 = vadd.xlane.f32.xlu0 %v638
        %v640 = vpop.xlane.xlu0 %639
        %v641 = vsel %vm328, %v549, 0.0
        %642 = vadd.xlane.f32.xlu0 %v641
        %v643 = vpop.xlane.xlu0 %642
        %v644 = vsel %vm328, %v551, 0.0
        %645 = vadd.xlane.f32.xlu0 %v644
        %v646 = vpop.xlane.xlu0 %645
        %v647 = vsel %vm328, %v553, 0.0
        %648 = vadd.xlane.f32.xlu0 %v647
        %v649 = vpop.xlane.xlu0 %648
        %v650 = vrcp.pop %v556
        %v651 = vmul.f32 1.1111112, %v650
        %v652 = vrcp.pop %v559
        %v653 = vmul.f32 1.1111112, %v652
        %v654 = vrcp.pop %v562
        %v655 = vmul.f32 1.1111112, %v654
        %v656 = vrcp.pop %v565
        %v657 = vmul.f32 1.1111112, %v656
        %v658 = vrcp.pop %v568
        %v659 = vmul.f32 1.1111112, %v658
        %v660 = vrcp.pop %v571
        %v661 = vmul.f32 1.1111112, %v660
        %v662 = vrcp.pop %v574
        %v663 = vmul.f32 1.1111112, %v662
        %v664 = vrcp.pop %v577
        %v665 = vmul.f32 1.1111112, %v664
        %v666 = vrcp.pop %v580
        %v667 = vmul.f32 1.1111112, %v666
        %v668 = vrcp.pop %v583
        %v669 = vmul.f32 1.1111112, %v668
        %v670 = vrcp.pop %v586
        %v671 = vmul.f32 1.1111112, %v670
        %v672 = vrcp.pop %v589
        %v673 = vmul.f32 1.1111112, %v672
        %v674 = vrcp.pop %v592
        %v675 = vmul.f32 1.1111112, %v674
        %v676 = vrcp.pop %v595
        %v677 = vmul.f32 1.1111112, %v676
        %v678 = vrcp.pop %v598
        %v679 = vmul.f32 1.1111112, %v678
        %v680 = vrcp.pop %v601
        %v681 = vmul.f32 1.1111112, %v680
        %v682 = vrcp.pop %v604
        %v683 = vmul.f32 1.1111112, %v682
        %v684 = vrcp.pop %v607
        %v685 = vmul.f32 1.1111112, %v684
        %v686 = vrcp.pop %v610
        %v687 = vmul.f32 1.1111112, %v686
        %v688 = vrcp.pop %v613
        %v689 = vmul.f32 1.1111112, %v688
        %v690 = vrcp.pop %v616
        %v691 = vmul.f32 1.1111112, %v690
        %v692 = vrcp.pop %v619
        %v693 = vmul.f32 1.1111112, %v692
        %v694 = vrcp.pop %v622
        %v695 = vmul.f32 1.1111112, %v694
        %v696 = vrcp.pop %v625
        %v697 = vmul.f32 1.1111112, %v696
        %v698 = vrcp.pop %v628
        %v699 = vmul.f32 1.1111112, %v698
        %v700 = vrcp.pop %v631
        %v701 = vmul.f32 1.1111112, %v700
        %v702 = vrcp.pop %v634
        %v703 = vmul.f32 1.1111112, %v702
        %v704 = vrcp.pop %v637
        %v705 = vmul.f32 1.1111112, %v704
        %v706 = vrcp.pop %v640
        %v707 = vmul.f32 1.1111112, %v706
        %v708 = vrcp.pop %v643
        %v709 = vmul.f32 1.1111112, %v708
        %v710 = vrcp.pop %v646
        %v711 = vmul.f32 1.1111112, %v710
        %v712 = vrcp.pop %v649
        %v713 = vmul.f32 1.1111112, %v712
        %v714 = vld [vmem:[%s259] sm:$0xff]
        %v715 = vld [vmem:[%s259 + $0x8] sm:$0xff]
        %v716 = vld [vmem:[%s259 + $0x10] sm:$0xff]
        %v717 = vld [vmem:[%s259 + $0x18] sm:$0xff]
        %v718 = vld [vmem:[%s259 + $0x20] sm:$0xff]
        %v719 = vld [vmem:[%s259 + $0x28] sm:$0xff]
        %v720 = vld [vmem:[%s259 + $0x30] sm:$0xff]
        %v721 = vld [vmem:[%s259 + $0x38] sm:$0xff]
        %v722 = vld [vmem:[%s259 + $0x40] sm:$0xff]
        %v723 = vld [vmem:[%s259 + $0x48] sm:$0xff]
        %v724 = vld [vmem:[%s259 + $0x50] sm:$0xff]
        %v725 = vld [vmem:[%s259 + $0x58] sm:$0xff]
        %v726 = vld [vmem:[%s259 + $0x60] sm:$0xff]
        %v727 = vld [vmem:[%s259 + $0x68] sm:$0xff]
        %v728 = vld [vmem:[%s259 + $0x70] sm:$0xff]
        %v729 = vld [vmem:[%s259 + $0x78] sm:$0xff]
        %v730 = vld [vmem:[%s259 + $0x80] sm:$0xff]
        %v731 = vld [vmem:[%s259 + $0x88] sm:$0xff]
        %v732 = vld [vmem:[%s259 + $0x90] sm:$0xff]
        %v733 = vld [vmem:[%s259 + $0x98] sm:$0xff]
        %v734 = vld [vmem:[%s259 + $0xa0] sm:$0xff]
        %v735 = vld [vmem:[%s259 + $0xa8] sm:$0xff]
        %v736 = vld [vmem:[%s259 + $0xb0] sm:$0xff]
        %v737 = vld [vmem:[%s259 + $0xb8] sm:$0xff]
        %v738 = vld [vmem:[%s259 + $0xc0] sm:$0xff]
        %v739 = vld [vmem:[%s259 + $0xc8] sm:$0xff]
        %v740 = vld [vmem:[%s259 + $0xd0] sm:$0xff]
        %v741 = vld [vmem:[%s259 + $0xd8] sm:$0xff]
        %v742 = vld [vmem:[%s259 + $0xe0] sm:$0xff]
        %v743 = vld [vmem:[%s259 + $0xe8] sm:$0xff]
        %v744 = vld [vmem:[%s259 + $0xf0] sm:$0xff]
        %v745 = vld [vmem:[%s259 + $0xf8] sm:$0xff]
        %vm746 = vcmp.ge.u32.totalorder %v714, 429496730
        %vm747 = vcmp.ge.u32.totalorder %v715, 429496730
        %vm748 = vcmp.ge.u32.totalorder %v716, 429496730
        %vm749 = vcmp.ge.u32.totalorder %v717, 429496730
        %vm750 = vcmp.ge.u32.totalorder %v718, 429496730
        %vm751 = vcmp.ge.u32.totalorder %v719, 429496730
        %vm752 = vcmp.ge.u32.totalorder %v720, 429496730
        %vm753 = vcmp.ge.u32.totalorder %v721, 429496730
        %vm754 = vcmp.ge.u32.totalorder %v722, 429496730
        %vm755 = vcmp.ge.u32.totalorder %v723, 429496730
        %vm756 = vcmp.ge.u32.totalorder %v724, 429496730
        %vm757 = vcmp.ge.u32.totalorder %v725, 429496730
        %vm758 = vcmp.ge.u32.totalorder %v726, 429496730
        %vm759 = vcmp.ge.u32.totalorder %v727, 429496730
        %vm760 = vcmp.ge.u32.totalorder %v728, 429496730
        %vm761 = vcmp.ge.u32.totalorder %v729, 429496730
        %vm762 = vcmp.ge.u32.totalorder %v730, 429496730
        %vm763 = vcmp.ge.u32.totalorder %v731, 429496730
        %vm764 = vcmp.ge.u32.totalorder %v732, 429496730
        %vm765 = vcmp.ge.u32.totalorder %v733, 429496730
        %vm766 = vcmp.ge.u32.totalorder %v734, 429496730
        %vm767 = vcmp.ge.u32.totalorder %v735, 429496730
        %vm768 = vcmp.ge.u32.totalorder %v736, 429496730
        %vm769 = vcmp.ge.u32.totalorder %v737, 429496730
        %vm770 = vcmp.ge.u32.totalorder %v738, 429496730
        %vm771 = vcmp.ge.u32.totalorder %v739, 429496730
        %vm772 = vcmp.ge.u32.totalorder %v740, 429496730
        %vm773 = vcmp.ge.u32.totalorder %v741, 429496730
        %vm774 = vcmp.ge.u32.totalorder %v742, 429496730
        %vm775 = vcmp.ge.u32.totalorder %v743, 429496730
        %vm776 = vcmp.ge.u32.totalorder %v744, 429496730
        %vm777 = vcmp.ge.u32.totalorder %v745, 429496730
        %v778 = vmul.f32 %v491, %v651
        %v779 = vmul.f32 %v493, %v653
        %v780 = vmul.f32 %v495, %v655
        %v781 = vmul.f32 %v497, %v657
        %v782 = vmul.f32 %v499, %v659
        %v783 = vmul.f32 %v501, %v661
        %v784 = vmul.f32 %v503, %v663
        %v785 = vmul.f32 %v505, %v665
        %v786 = vmul.f32 %v507, %v667
        %v787 = vmul.f32 %v509, %v669
        %v788 = vmul.f32 %v511, %v671
        %v789 = vmul.f32 %v513, %v673
        %v790 = vmul.f32 %v515, %v675
        %v791 = vmul.f32 %v517, %v677
        %v792 = vmul.f32 %v519, %v679
        %v793 = vmul.f32 %v521, %v681
        %v794 = vmul.f32 %v523, %v683
        %v795 = vmul.f32 %v525, %v685
        %v796 = vmul.f32 %v527, %v687
        %v797 = vmul.f32 %v529, %v689
        %v798 = vmul.f32 %v531, %v691
        %v799 = vmul.f32 %v533, %v693
        %v800 = vmul.f32 %v535, %v695
        %v801 = vmul.f32 %v537, %v697
        %v802 = vmul.f32 %v539, %v699
        %v803 = vmul.f32 %v541, %v701
        %v804 = vmul.f32 %v543, %v703
        %v805 = vmul.f32 %v545, %v705
        %v806 = vmul.f32 %v547, %v707
        %v807 = vmul.f32 %v549, %v709
        %v808 = vmul.f32 %v551, %v711
        %v809 = vmul.f32 %v553, %v713
        %v810 = vsel %vm746, %v778, 0.0
        %v811 = vsel %vm747, %v779, 0.0
        %v812 = vsel %vm748, %v780, 0.0
        %v813 = vsel %vm749, %v781, 0.0
        %v814 = vsel %vm750, %v782, 0.0
        %v815 = vsel %vm751, %v783, 0.0
        %v816 = vsel %vm752, %v784, 0.0
        %v817 = vsel %vm753, %v785, 0.0
        %v818 = vsel %vm754, %v786, 0.0
        %v819 = vsel %vm755, %v787, 0.0
        %v820 = vsel %vm756, %v788, 0.0
        %v821 = vsel %vm757, %v789, 0.0
        %v822 = vsel %vm758, %v790, 0.0
        %v823 = vsel %vm759, %v791, 0.0
        %v824 = vsel %vm760, %v792, 0.0
        %v825 = vsel %vm761, %v793, 0.0
        %v826 = vsel %vm762, %v794, 0.0
        %v827 = vsel %vm763, %v795, 0.0
        %v828 = vsel %vm764, %v796, 0.0
        %v829 = vsel %vm765, %v797, 0.0
        %v830 = vsel %vm766, %v798, 0.0
        %v831 = vsel %vm767, %v799, 0.0
        %v832 = vsel %vm768, %v800, 0.0
        %v833 = vsel %vm769, %v801, 0.0
        %v834 = vsel %vm770, %v802, 0.0
        %v835 = vsel %vm771, %v803, 0.0
        %v836 = vsel %vm772, %v804, 0.0
        %v837 = vsel %vm773, %v805, 0.0
        %v838 = vsel %vm774, %v806, 0.0
        %v839 = vsel %vm775, %v807, 0.0
        %v840 = vsel %vm776, %v808, 0.0
        %v841 = vsel %vm777, %v809, 0.0
        %v842 = vpack.c.bf16 %v811, %v810
        %v843 = vpack.c.bf16 %v813, %v812
        %v844 = vpack.c.bf16 %v815, %v814
        %v845 = vpack.c.bf16 %v817, %v816
        %v846 = vpack.c.bf16 %v819, %v818
        %v847 = vpack.c.bf16 %v821, %v820
        %v848 = vpack.c.bf16 %v823, %v822
        %v849 = vpack.c.bf16 %v825, %v824
        %v850 = vpack.c.bf16 %v827, %v826
        %v851 = vpack.c.bf16 %v829, %v828
        %v852 = vpack.c.bf16 %v831, %v830
        %v853 = vpack.c.bf16 %v833, %v832
        %v854 = vpack.c.bf16 %v835, %v834
        %v855 = vpack.c.bf16 %v837, %v836
        %v856 = vpack.c.bf16 %v839, %v838
        %v857 = vpack.c.bf16 %v841, %v840
        %v858 = vld [vmem:[%s250] sm:$0xff]
        %v859 = vld [vmem:[%s250 + $0x8] sm:$0xff]
        %v860 = vld [vmem:[%s250 + $0x10] sm:$0xff]
        %v861 = vld [vmem:[%s250 + $0x18] sm:$0xff]
        %v862 = vld [vmem:[%s250 + $0x20] sm:$0xff]
        %v863 = vld [vmem:[%s250 + $0x28] sm:$0xff]
        %v864 = vld [vmem:[%s250 + $0x30] sm:$0xff]
        %v865 = vld [vmem:[%s250 + $0x38] sm:$0xff]
        %v866 = vld [vmem:[%s250 + $0x40] sm:$0xff]
        %v867 = vld [vmem:[%s250 + $0x48] sm:$0xff]
        %v868 = vld [vmem:[%s250 + $0x50] sm:$0xff]
        %v869 = vld [vmem:[%s250 + $0x58] sm:$0xff]
        %v870 = vld [vmem:[%s250 + $0x60] sm:$0xff]
        %v871 = vld [vmem:[%s250 + $0x68] sm:$0xff]
        %v872 = vld [vmem:[%s250 + $0x70] sm:$0xff]
        %v873 = vld [vmem:[%s250 + $0x78] sm:$0xff]
        %v874 = vld [vmem:[%s250 + $0x80] sm:$0xff]
        %v875 = vld [vmem:[%s250 + $0x88] sm:$0xff]
        %v876 = vld [vmem:[%s250 + $0x90] sm:$0xff]
        %v877 = vld [vmem:[%s250 + $0x98] sm:$0xff]
        %v878 = vld [vmem:[%s250 + $0xa0] sm:$0xff]
        %v879 = vld [vmem:[%s250 + $0xa8] sm:$0xff]
        %v880 = vld [vmem:[%s250 + $0xb0] sm:$0xff]
        %v881 = vld [vmem:[%s250 + $0xb8] sm:$0xff]
        %v882 = vld [vmem:[%s250 + $0xc0] sm:$0xff]
        %v883 = vld [vmem:[%s250 + $0xc8] sm:$0xff]
        %v884 = vld [vmem:[%s250 + $0xd0] sm:$0xff]
        %v885 = vld [vmem:[%s250 + $0xd8] sm:$0xff]
        %v886 = vld [vmem:[%s250 + $0xe0] sm:$0xff]
        %v887 = vld [vmem:[%s250 + $0xe8] sm:$0xff]
        %v888 = vld [vmem:[%s250 + $0xf0] sm:$0xff]
        %v889 = vld [vmem:[%s250 + $0xf8] sm:$0xff]
        %v890 = vpack.c.bf16 %v859, %v858
        %v891 = vpack.c.bf16 %v861, %v860
        %v892 = vpack.c.bf16 %v863, %v862
        %v893 = vpack.c.bf16 %v865, %v864
        %v894 = vpack.c.bf16 %v867, %v866
        %v895 = vpack.c.bf16 %v869, %v868
        %v896 = vpack.c.bf16 %v871, %v870
        %v897 = vpack.c.bf16 %v873, %v872
        %v898 = vpack.c.bf16 %v875, %v874
        %v899 = vpack.c.bf16 %v877, %v876
        %v900 = vpack.c.bf16 %v879, %v878
        %v901 = vpack.c.bf16 %v881, %v880
        %v902 = vpack.c.bf16 %v883, %v882
        %v903 = vpack.c.bf16 %v885, %v884
        %v904 = vpack.c.bf16 %v887, %v886
        %v905 = vpack.c.bf16 %v889, %v888
        %v907 = vsel %vm328, %v842, 0
        %v910 = vsel %vm328, %v843, 0
        %v913 = vsel %vm328, %v844, 0
        %v916 = vsel %vm328, %v845, 0
        %918 = vmatprep.subr.bf16.mxu0 0
        %919 = vmatpush1.bf16.msra.mxu0 %v890
        %920 = vmatprep.subr.bf16.mxu0 0
        %921 = vmatpush1.bf16.msra.mxu0 %v891
        %922 = vmatprep.subr.bf16.mxu0 0
        %923 = vmatpush1.bf16.msra.mxu0 %v892
        %924 = vmatprep.subr.bf16.mxu0 0
        %925 = vmatpush1.bf16.msra.mxu0 %v893
        %926 = vmatprep.subr.bf16.mxu0 0
        %927 = vmatpush1.bf16.msra.mxu0 0
        %928 = vmatprep.subr.bf16.mxu0 0
        %929 = vmatpush1.bf16.msra.mxu0 0
        %930 = vmatprep.subr.bf16.mxu0 0
        %931 = vmatpush1.bf16.msra.mxu0 0
        %932 = vmatprep.subr.bf16.mxu0 0
        %933 = vmatpush1.bf16.msra.mxu0 0
        %934 = vmatprep.subr.bf16.mxu0 0
        %935 = vmatpush1.bf16.msra.mxu0 0
        %936 = vmatprep.subr.bf16.mxu0 0
        %937 = vmatpush1.bf16.msra.mxu0 0
        %938 = vmatprep.subr.bf16.mxu0 0
        %939 = vmatpush1.bf16.msra.mxu0 0
        %940 = vmatprep.subr.bf16.mxu0 0
        %941 = vmatpush1.bf16.msra.mxu0 0
        %942 = vmatprep.subr.bf16.mxu0 0
        %943 = vmatpush1.bf16.msra.mxu0 0
        %944 = vmatprep.subr.bf16.mxu0 0
        %945 = vmatpush1.bf16.msra.mxu0 0
        %946 = vmatprep.subr.bf16.mxu0 0
        %947 = vmatpush1.bf16.msra.mxu0 0
        %948 = vmatprep.subr.bf16.mxu0 0
        %949 = vmatpush1.bf16.msra.mxu0 0
        %950 = vmatprep.mubr.bf16.mxu0 0
        %951 = vmatmul.mubr.bf16.gmra.mrb[0].mxu0 %v907
        %v952 = vpop.f32.mrb[0].mxu0
        %v953 = vadd.f32 0.0, %v952
        %v954 = vpop.f32.mrb[0].mxu0
        %v955 = vpop.f32.mrb[0].mxu0
        %v956 = vadd.f32 0.0, %v955
        %v957 = vpop.f32.mrb[0].mxu0
        %958 = vmatprep.mubr.bf16.mxu0 0
        %959 = vmatmul.mubr.bf16.gmra.mrb[0].mxu0 %v910
        %v960 = vpop.f32.mrb[0].mxu0
        %v961 = vadd.f32 0.0, %v960
        %v962 = vpop.f32.mrb[0].mxu0
        %v963 = vpop.f32.mrb[0].mxu0
        %v964 = vadd.f32 0.0, %v963
        %v965 = vpop.f32.mrb[0].mxu0
        %966 = vmatprep.mubr.bf16.mxu0 0
        %967 = vmatmul.mubr.bf16.gmra.mrb[0].mxu0 %v913
        %v968 = vpop.f32.mrb[0].mxu0
        %v969 = vadd.f32 0.0, %v968
        %v970 = vpop.f32.mrb[0].mxu0
        %v971 = vpop.f32.mrb[0].mxu0
        %v972 = vadd.f32 0.0, %v971
        %v973 = vpop.f32.mrb[0].mxu0
        %974 = vmatprep.mubr.bf16.mxu0 0
        %975 = vmatmul.mubr.bf16.gmra.mrb[0].mxu0 %v916
        %v976 = vpop.f32.mrb[0].mxu0
        %v977 = vadd.f32 0.0, %v976
        %v978 = vpop.f32.mrb[0].mxu0
        %v979 = vpop.f32.mrb[0].mxu0
        %v980 = vadd.f32 0.0, %v979
        %v981 = vpop.f32.mrb[0].mxu0
        %982 = vdwg.mxu0
        %v984 = vsel %vm328, %v846, 0
        %v987 = vsel %vm328, %v847, 0
        %v990 = vsel %vm328, %v848, 0
        %v993 = vsel %vm328, %v849, 0
        %995 = vmatprep.subr.bf16.mxu0 0
        %996 = vmatpush1.bf16.msra.mxu0 %v894
        %997 = vmatprep.subr.bf16.mxu0 0
        %998 = vmatpush1.bf16.msra.mxu0 %v895
        %999 = vmatprep.subr.bf16.mxu0 0
        %1000 = vmatpush1.bf16.msra.mxu0 %v896
        %1001 = vmatprep.subr.bf16.mxu0 0
        %1002 = vmatpush1.bf16.msra.mxu0 %v897
        %1003 = vmatprep.subr.bf16.mxu0 0
        %1004 = vmatpush1.bf16.msra.mxu0 0
        %1005 = vmatprep.subr.bf16.mxu0 0
        %1006 = vmatpush1.bf16.msra.mxu0 0
        %1007 = vmatprep.subr.bf16.mxu0 0
        %1008 = vmatpush1.bf16.msra.mxu0 0
        %1009 = vmatprep.subr.bf16.mxu0 0
        %1010 = vmatpush1.bf16.msra.mxu0 0
        %1011 = vmatprep.subr.bf16.mxu0 0
        %1012 = vmatpush1.bf16.msra.mxu0 0
        %1013 = vmatprep.subr.bf16.mxu0 0
        %1014 = vmatpush1.bf16.msra.mxu0 0
        %1015 = vmatprep.subr.bf16.mxu0 0
        %1016 = vmatpush1.bf16.msra.mxu0 0
        %1017 = vmatprep.subr.bf16.mxu0 0
        %1018 = vmatpush1.bf16.msra.mxu0 0
        %1019 = vmatprep.subr.bf16.mxu0 0
        %1020 = vmatpush1.bf16.msra.mxu0 0
        %1021 = vmatprep.subr.bf16.mxu0 0
        %1022 = vmatpush1.bf16.msra.mxu0 0
        %1023 = vmatprep.subr.bf16.mxu0 0
        %1024 = vmatpush1.bf16.msra.mxu0 0
        %1025 = vmatprep.subr.bf16.mxu0 0
        %1026 = vmatpush1.bf16.msra.mxu0 0
        %1027 = vmatprep.mubr.bf16.mxu0 0
        %1028 = vmatmul.mubr.bf16.gmra.mrb[0].mxu0 %v984
        %v1029 = vpop.f32.mrb[0].mxu0
        %v1030 = vadd.f32 0.0, %v1029
        %v1031 = vpop.f32.mrb[0].mxu0
        %v1032 = vpop.f32.mrb[0].mxu0
        %v1033 = vadd.f32 0.0, %v1032
        %v1034 = vpop.f32.mrb[0].mxu0
        %1035 = vmatprep.mubr.bf16.mxu0 0
        %1036 = vmatmul.mubr.bf16.gmra.mrb[0].mxu0 %v987
        %v1037 = vpop.f32.mrb[0].mxu0
        %v1038 = vadd.f32 0.0, %v1037
        %v1039 = vpop.f32.mrb[0].mxu0
        %v1040 = vpop.f32.mrb[0].mxu0
        %v1041 = vadd.f32 0.0, %v1040
        %v1042 = vpop.f32.mrb[0].mxu0
        %1043 = vmatprep.mubr.bf16.mxu0 0
        %1044 = vmatmul.mubr.bf16.gmra.mrb[0].mxu0 %v990
        %v1045 = vpop.f32.mrb[0].mxu0
        %v1046 = vadd.f32 0.0, %v1045
        %v1047 = vpop.f32.mrb[0].mxu0
        %v1048 = vpop.f32.mrb[0].mxu0
        %v1049 = vadd.f32 0.0, %v1048
        %v1050 = vpop.f32.mrb[0].mxu0
        %1051 = vmatprep.mubr.bf16.mxu0 0
        %1052 = vmatmul.mubr.bf16.gmra.mrb[0].mxu0 %v993
        %v1053 = vpop.f32.mrb[0].mxu0
        %v1054 = vadd.f32 0.0, %v1053
        %v1055 = vpop.f32.mrb[0].mxu0
        %v1056 = vpop.f32.mrb[0].mxu0
        %v1057 = vadd.f32 0.0, %v1056
        %v1058 = vpop.f32.mrb[0].mxu0
        %1059 = vdwg.mxu0
        %v1061 = vsel %vm328, %v850, 0
        %v1064 = vsel %vm328, %v851, 0
        %v1067 = vsel %vm328, %v852, 0
        %v1070 = vsel %vm328, %v853, 0
        %1072 = vmatprep.subr.bf16.mxu0 0
        %1073 = vmatpush1.bf16.msra.mxu0 %v898
        %1074 = vmatprep.subr.bf16.mxu0 0
        %1075 = vmatpush1.bf16.msra.mxu0 %v899
        %1076 = vmatprep.subr.bf16.mxu0 0
        %1077 = vmatpush1.bf16.msra.mxu0 %v900
        %1078 = vmatprep.subr.bf16.mxu0 0
        %1079 = vmatpush1.bf16.msra.mxu0 %v901
        %1080 = vmatprep.subr.bf16.mxu0 0
        %1081 = vmatpush1.bf16.msra.mxu0 0
        %1082 = vmatprep.subr.bf16.mxu0 0
        %1083 = vmatpush1.bf16.msra.mxu0 0
        %1084 = vmatprep.subr.bf16.mxu0 0
        %1085 = vmatpush1.bf16.msra.mxu0 0
        %1086 = vmatprep.subr.bf16.mxu0 0
        %1087 = vmatpush1.bf16.msra.mxu0 0
        %1088 = vmatprep.subr.bf16.mxu0 0
        %1089 = vmatpush1.bf16.msra.mxu0 0
        %1090 = vmatprep.subr.bf16.mxu0 0
        %1091 = vmatpush1.bf16.msra.mxu0 0
        %1092 = vmatprep.subr.bf16.mxu0 0
        %1093 = vmatpush1.bf16.msra.mxu0 0
        %1094 = vmatprep.subr.bf16.mxu0 0
        %1095 = vmatpush1.bf16.msra.mxu0 0
        %1096 = vmatprep.subr.bf16.mxu0 0
        %1097 = vmatpush1.bf16.msra.mxu0 0
        %1098 = vmatprep.subr.bf16.mxu0 0
        %1099 = vmatpush1.bf16.msra.mxu0 0
        %1100 = vmatprep.subr.bf16.mxu0 0
        %1101 = vmatpush1.bf16.msra.mxu0 0
        %1102 = vmatprep.subr.bf16.mxu0 0
        %1103 = vmatpush1.bf16.msra.mxu0 0
        %1104 = vmatprep.mubr.bf16.mxu0 0
        %1105 = vmatmul.mubr.bf16.gmra.mrb[0].mxu0 %v1061
        %v1106 = vpop.f32.mrb[0].mxu0
        %v1107 = vadd.f32 0.0, %v1106
        %v1108 = vpop.f32.mrb[0].mxu0
        %v1109 = vpop.f32.mrb[0].mxu0
        %v1110 = vadd.f32 0.0, %v1109
        %v1111 = vpop.f32.mrb[0].mxu0
        %1112 = vmatprep.mubr.bf16.mxu0 0
        %1113 = vmatmul.mubr.bf16.gmra.mrb[0].mxu0 %v1064
        %v1114 = vpop.f32.mrb[0].mxu0
        %v1115 = vadd.f32 0.0, %v1114
        %v1116 = vpop.f32.mrb[0].mxu0
        %v1117 = vpop.f32.mrb[0].mxu0
        %v1118 = vadd.f32 0.0, %v1117
        %v1119 = vpop.f32.mrb[0].mxu0
        %1120 = vmatprep.mubr.bf16.mxu0 0
        %1121 = vmatmul.mubr.bf16.gmra.mrb[0].mxu0 %v1067
        %v1122 = vpop.f32.mrb[0].mxu0
        %v1123 = vadd.f32 0.0, %v1122
        %v1124 = vpop.f32.mrb[0].mxu0
        %v1125 = vpop.f32.mrb[0].mxu0
        %v1126 = vadd.f32 0.0, %v1125
        %v1127 = vpop.f32.mrb[0].mxu0
        %1128 = vmatprep.mubr.bf16.mxu0 0
        %1129 = vmatmul.mubr.bf16.gmra.mrb[0].mxu0 %v1070
        %v1130 = vpop.f32.mrb[0].mxu0
        %v1131 = vadd.f32 0.0, %v1130
        %v1132 = vpop.f32.mrb[0].mxu0
        %v1133 = vpop.f32.mrb[0].mxu0
        %v1134 = vadd.f32 0.0, %v1133
        %v1135 = vpop.f32.mrb[0].mxu0
        %1136 = vdwg.mxu0
        %v1138 = vsel %vm328, %v854, 0
        %v1141 = vsel %vm328, %v855, 0
        %v1144 = vsel %vm328, %v856, 0
        %v1147 = vsel %vm328, %v857, 0
        %1149 = vmatprep.subr.bf16.mxu0 0
        %1150 = vmatpush1.bf16.msra.mxu0 %v902
        %1151 = vmatprep.subr.bf16.mxu0 0
        %1152 = vmatpush1.bf16.msra.mxu0 %v903
        %1153 = vmatprep.subr.bf16.mxu0 0
        %1154 = vmatpush1.bf16.msra.mxu0 %v904
        %1155 = vmatprep.subr.bf16.mxu0 0
        %1156 = vmatpush1.bf16.msra.mxu0 %v905
        %1157 = vmatprep.subr.bf16.mxu0 0
        %1158 = vmatpush1.bf16.msra.mxu0 0
        %1159 = vmatprep.subr.bf16.mxu0 0
        %1160 = vmatpush1.bf16.msra.mxu0 0
        %1161 = vmatprep.subr.bf16.mxu0 0
        %1162 = vmatpush1.bf16.msra.mxu0 0
        %1163 = vmatprep.subr.bf16.mxu0 0
        %1164 = vmatpush1.bf16.msra.mxu0 0
        %1165 = vmatprep.subr.bf16.mxu0 0
        %1166 = vmatpush1.bf16.msra.mxu0 0
        %1167 = vmatprep.subr.bf16.mxu0 0
        %1168 = vmatpush1.bf16.msra.mxu0 0
        %1169 = vmatprep.subr.bf16.mxu0 0
        %1170 = vmatpush1.bf16.msra.mxu0 0
        %1171 = vmatprep.subr.bf16.mxu0 0
        %1172 = vmatpush1.bf16.msra.mxu0 0
        %1173 = vmatprep.subr.bf16.mxu0 0
        %1174 = vmatpush1.bf16.msra.mxu0 0
        %1175 = vmatprep.subr.bf16.mxu0 0
        %1176 = vmatpush1.bf16.msra.mxu0 0
        %1177 = vmatprep.subr.bf16.mxu0 0
        %1178 = vmatpush1.bf16.msra.mxu0 0
        %1179 = vmatprep.subr.bf16.mxu0 0
        %1180 = vmatpush1.bf16.msra.mxu0 0
        %1181 = vmatprep.mubr.bf16.mxu0 0
        %1182 = vmatmul.mubr.bf16.gmra.mrb[0].mxu0 %v1138
        %v1183 = vpop.f32.mrb[0].mxu0
        %v1184 = vadd.f32 0.0, %v1183
        %v1185 = vpop.f32.mrb[0].mxu0
        %v1186 = vpop.f32.mrb[0].mxu0
        %v1187 = vadd.f32 0.0, %v1186
        %v1188 = vpop.f32.mrb[0].mxu0
        %1189 = vmatprep.mubr.bf16.mxu0 0
        %1190 = vmatmul.mubr.bf16.gmra.mrb[0].mxu0 %v1141
        %v1191 = vpop.f32.mrb[0].mxu0
        %v1192 = vadd.f32 0.0, %v1191
        %v1193 = vpop.f32.mrb[0].mxu0
        %v1194 = vpop.f32.mrb[0].mxu0
        %v1195 = vadd.f32 0.0, %v1194
        %v1196 = vpop.f32.mrb[0].mxu0
        %1197 = vmatprep.mubr.bf16.mxu0 0
        %1198 = vmatmul.mubr.bf16.gmra.mrb[0].mxu0 %v1144
        %v1199 = vpop.f32.mrb[0].mxu0
        %v1200 = vadd.f32 0.0, %v1199
        %v1201 = vpop.f32.mrb[0].mxu0
        %v1202 = vpop.f32.mrb[0].mxu0
        %v1203 = vadd.f32 0.0, %v1202
        %v1204 = vpop.f32.mrb[0].mxu0
        %1205 = vmatprep.mubr.bf16.mxu0 0
        %1206 = vmatmul.mubr.bf16.gmra.mrb[0].mxu0 %v1147
        %v1207 = vpop.f32.mrb[0].mxu0
        %v1208 = vadd.f32 0.0, %v1207
        %v1209 = vpop.f32.mrb[0].mxu0
        %v1210 = vpop.f32.mrb[0].mxu0
        %v1211 = vadd.f32 0.0, %v1210
        %v1212 = vpop.f32.mrb[0].mxu0
        %1213 = vdwg.mxu0
        %1214 = vst.msk [vmem:[%s293] sm:$0xff] %vm328, %v953
        %1215 = vst.msk [vmem:[%s293 + $0x8] sm:$0xff] %vm328, %v956
        %1216 = vst.msk [vmem:[%s293 + $0x10] sm:$0xff] %vm328, %v961
        %1217 = vst.msk [vmem:[%s293 + $0x18] sm:$0xff] %vm328, %v964
        %1218 = vst.msk [vmem:[%s293 + $0x20] sm:$0xff] %vm328, %v969
        %1219 = vst.msk [vmem:[%s293 + $0x28] sm:$0xff] %vm328, %v972
        %1220 = vst.msk [vmem:[%s293 + $0x30] sm:$0xff] %vm328, %v977
        %1221 = vst.msk [vmem:[%s293 + $0x38] sm:$0xff] %vm328, %v980
        %1222 = vst.msk [vmem:[%s293 + $0x40] sm:$0xff] %vm328, %v1030
        %1223 = vst.msk [vmem:[%s293 + $0x48] sm:$0xff] %vm328, %v1033
        %1224 = vst.msk [vmem:[%s293 + $0x50] sm:$0xff] %vm328, %v1038
        %1225 = vst.msk [vmem:[%s293 + $0x58] sm:$0xff] %vm328, %v1041
        %1226 = vst.msk [vmem:[%s293 + $0x60] sm:$0xff] %vm328, %v1046
        %1227 = vst.msk [vmem:[%s293 + $0x68] sm:$0xff] %vm328, %v1049
        %1228 = vst.msk [vmem:[%s293 + $0x70] sm:$0xff] %vm328, %v1054
        %1229 = vst.msk [vmem:[%s293 + $0x78] sm:$0xff] %vm328, %v1057
        %1230 = vst.msk [vmem:[%s293 + $0x80] sm:$0xff] %vm328, %v1107
        %1231 = vst.msk [vmem:[%s293 + $0x88] sm:$0xff] %vm328, %v1110
        %1232 = vst.msk [vmem:[%s293 + $0x90] sm:$0xff] %vm328, %v1115
        %1233 = vst.msk [vmem:[%s293 + $0x98] sm:$0xff] %vm328, %v1118
        %1234 = vst.msk [vmem:[%s293 + $0xa0] sm:$0xff] %vm328, %v1123
        %1235 = vst.msk [vmem:[%s293 + $0xa8] sm:$0xff] %vm328, %v1126
        %1236 = vst.msk [vmem:[%s293 + $0xb0] sm:$0xff] %vm328, %v1131
        %1237 = vst.msk [vmem:[%s293 + $0xb8] sm:$0xff] %vm328, %v1134
        %1238 = vst.msk [vmem:[%s293 + $0xc0] sm:$0xff] %vm328, %v1184
        %1239 = vst.msk [vmem:[%s293 + $0xc8] sm:$0xff] %vm328, %v1187
        %1240 = vst.msk [vmem:[%s293 + $0xd0] sm:$0xff] %vm328, %v1192
        %1241 = vst.msk [vmem:[%s293 + $0xd8] sm:$0xff] %vm328, %v1195
        %1242 = vst.msk [vmem:[%s293 + $0xe0] sm:$0xff] %vm328, %v1200
        %1243 = vst.msk [vmem:[%s293 + $0xe8] sm:$0xff] %vm328, %v1203
        %1244 = vst.msk [vmem:[%s293 + $0xf0] sm:$0xff] %vm328, %v1208
        %1245 = vst.msk [vmem:[%s293 + $0xf8] sm:$0xff] %vm328, %v1211
        %s1246 = sand.u32 %s132, 1
        %s1247 = scalar_lea.sflag [#allocation5], %s1246
        %s1248 = sand.u32 %s132, 1
        %s1249 = smul.addr %s1248, 256
        %s1250 = scalar_lea.vmem [#allocation9], %s1249
        // Predicated region
        $region49: #{attention_tail.1} parent=35 // pred_check
          %p1251 = pneg %p142
        $region50: #{attention_tail.1} parent=35 // pred_check_branch
          %1253 = sbr.rel (%p1251) target = $region52
        $region51: #{attention_tail.1} parent=35 // pred_region
          %s1255 = ssub.s32 4096, 4096
          %1256 = vsyncadd %s1247, %s1255
          %s1257 = smul.addr %s25, 32
          %s1258 = smul.addr %s1257, 128
          %s1259 = scalar_lea.hbm %s4, %s1258
          %s1260 = sshll.u32 %s1250, 4
          %s1261 = int_to_ptr.vmem [resolvable:$true] %s1260
          %1266 = dma.vmem_to_hbm [thread:$0]  %s1261, 4096, %s1259, %s1247, 128, 128, 8
        $region52: #{attention_tail.1} parent=35 // pred_fallthru
          _
      $region36: #{attention_tail.1} parent=5 // pred_fallthru
        _
      %p1267 = scmp.le.s32.totalorder 2, %s20
      // Predicated region
      $region53: #{attention_tail.1} parent=5 // pred_check
        %p1268 = pneg %p1267
      $region54: #{attention_tail.1} parent=5 // pred_check_branch
        %1270 = sbr.rel (%p1268) target = $region56
      $region55: #{attention_tail.1} parent=5 // pred_region
        %s1271 = ssub.s32 %s20, 2
        // Predicated region
        $region57: #{attention_tail.1} parent=55 // pred_check
          %p1272 = pneg %p148
        $region58: #{attention_tail.1} parent=55 // pred_check_branch
          %1274 = sbr.rel (%p1272) target = $region60
        $region59: #{attention_tail.1} parent=55 // pred_region
          %s1275 = sand.u32 %s133, 1
          %s1276 = scalar_lea.sflag [#allocation5], %s1275
          %s1277 = sand.u32 %s133, 1
          %s1278 = smul.addr %s1277, 256
          %s1279 = scalar_lea.vmem [#allocation9], %s1278
          %1280 = dma.done %s1276, 4096
        $region60: #{attention_tail.1} parent=55 // pred_fallthru
          _
      $region56: #{attention_tail.1} parent=5 // pred_fallthru
        _
    $region6: #{attention_tail.1} parent=1 // loop_footer
      %s24 = sadd.s32 1, %s20
    $region7: #{attention_tail.1} parent=1 // loop_footer_branch
      %19 = sbr.rel target = $region3
    $region8: #{attention_tail.1} parent=1 // loop_exit
      _
    %1281 = vsyncpa [#allocation4], 1
    %s1282 = scalar_lea.sflag [#allocation4], 1
    %1283 = vsyncpa %s1282, 1
    %1284 = vsyncpa [#allocation7], 1
    %s1285 = scalar_lea.sflag [#allocation7], 1
    %1286 = vsyncpa %s1285, 1
    %1287 = vsyncpa [#allocation5], 1
    %s1288 = scalar_lea.sflag [#allocation5], 1
    %1289 = vsyncpa %s1288, 1

</llo_original>
